<compile_context>
chip_gen: v6e
topology: v6e:2x2x1
jax: 0.10.0
libtpu: 0.0.40
codegen_flags: <defaults>
</compile_context>

<pallas_src>
import functools

import jax
import jax.numpy as jnp
from jax.experimental import pallas as pl
from jax.experimental.pallas import tpu as pltpu


def _label_smooth_entropy_kernel(
    preds_ref, targets_ref, out_ref, *, lb_pos, lb_neg, n_valid, c_valid, tile_n
):
    # preds_ref: (TILE_N, C_pad) float, targets_ref: (TILE_N, 1) int32,
    # out_ref: (1, 1) float32 accumulator (same block across the whole grid).
    i = pl.program_id(0)

    x = preds_ref[...].astype(jnp.float32)                       # (TILE_N, C_pad)
    tgt = targets_ref[...]                                       # (TILE_N, 1) int32

    col = jax.lax.broadcasted_iota(jnp.int32, x.shape, 1)        # (TILE_N, C_pad)
    col_valid = col < c_valid

    # Numerically stable logsumexp over the real classes only.
    m = jnp.max(jnp.where(col_valid, x, -jnp.inf), axis=1, keepdims=True)   # (TILE_N,1)
    e = jnp.where(col_valid, jnp.exp(x - m), 0.0)                           # (TILE_N,C_pad)
    lse = jnp.log(jnp.sum(e, axis=1, keepdims=True))                        # (TILE_N,1)

    # Row sums needed by the algebraic form (no (N,C) smoothed matrix).
    sum_x = jnp.sum(jnp.where(col_valid, x, 0.0), axis=1, keepdims=True)    # (TILE_N,1)
    x_t = jnp.sum(jnp.where(col == tgt, x, 0.0), axis=1, keepdims=True)     # (TILE_N,1)

    # sum_c log_softmax = sum_c x - C*(m + lse);  logp[target] = x[target] - m - lse
    sum_logsoft = sum_x - jnp.float32(c_valid) * (m + lse)
    logp_t = x_t - m - lse

    per_row = -(lb_pos - lb_neg) * logp_t - lb_neg * sum_logsoft            # (TILE_N,1)

    # Mask padded tail rows so they don't bias the mean.
    row = jax.lax.broadcasted_iota(jnp.int32, per_row.shape, 0) + i * tile_n
    per_row = jnp.where(row < n_valid, per_row, 0.0)

    partial = jnp.sum(per_row, axis=0, keepdims=True)                       # (1,1)

    @pl.when(i == 0)
    def _():
        out_ref[...] = jnp.zeros_like(out_ref)

    out_ref[...] += partial

    @pl.when(i == pl.num_programs(0) - 1)
    def _():
        out_ref[...] = out_ref[...] * jnp.float32(1.0 / n_valid)            # 'mean'


def label_smooth_entropy(preds, targets, smooth=0.1, tile_n=256):
    """preds: (N, C) float array, targets: (N,) int array. Returns scalar f32."""
    n, c = preds.shape
    lb_pos = 1.0 - smooth
    lb_neg = smooth / (n - 1)        # NOTE: matches the PyTorch module (batch dim quirk)

    # Lane-dense class dim: pad C up to a multiple of 128.
    c_pad = max(128, ((c + 127) // 128) * 128)

    # Batch tile: multiple of 8 (f32 sublane), no bigger than needed, and capped
    # so a double-buffered preds tile stays well under the VMEM scoped limit
    # (conservative ~8 MiB per buffer -> safe on v5e/v6e/v7x).
    bytes_per_row = c_pad * 4
    max_rows = max(8, (8 * 1024 * 1024) // bytes_per_row)
    n_rounded = ((n + 7) // 8) * 8
    tile = max(8, min(tile_n, max_rows, n_rounded))
    tile = (tile // 8) * 8
    n_pad = ((n + tile - 1) // tile) * tile
    grid = (n_pad // tile,)

    preds_p = jnp.zeros((n_pad, c_pad), preds.dtype).at[:n, :c].set(preds)
    targets_p = jnp.zeros((n_pad, 1), jnp.int32).at[:n, 0].set(targets.astype(jnp.int32))

    kernel = functools.partial(
        _label_smooth_entropy_kernel,
        lb_pos=lb_pos,
        lb_neg=lb_neg,
        n_valid=n,
        c_valid=c,
        tile_n=tile,
    )

    out = pl.pallas_call(
        kernel,
        out_shape=jax.ShapeDtypeStruct((1, 1), jnp.float32),
        grid=grid,
        in_specs=[
            pl.BlockSpec((tile, c_pad), lambda i: (i, 0)),   # preds batch tile
            pl.BlockSpec((tile, 1), lambda i: (i, 0)),       # targets batch tile
        ],
        out_specs=pl.BlockSpec((1, 1), lambda i: (0, 0)),    # resident accumulator
        compiler_params=pltpu.CompilerParams(
            dimension_semantics=("arbitrary",),              # reduction axis
        ),
        cost_estimate=pl.CostEstimate(
            flops=5 * n * c,
            transcendentals=n * c,
            bytes_accessed=n * c * preds.dtype.itemsize + n * 4 + 4,
        ),
    )(preds_p, targets_p)
    return out[0, 0]


def _reference(preds, targets, smooth=0.1):
    # Pure-JAX reference mirroring the PyTorch forward (incl. the N-1 quirk).
    n, c = preds.shape
    lb_pos = 1.0 - smooth
    lb_neg = smooth / (n - 1)
    onehot = jax.nn.one_hot(targets, c, dtype=jnp.float32)
    smoothed = onehot * lb_pos + (1.0 - onehot) * lb_neg
    log_soft = jax.nn.log_softmax(preds.astype(jnp.float32), axis=1)
    loss = (-log_soft * smoothed).sum(axis=1)
    return loss.mean()


if __name__ == "__main__":
    key = jax.random.PRNGKey(0)
    k1, k2 = jax.random.split(key)

    # Small shapes chosen to exercise batch tiling (grid > 1), tail-row masking
    # (N not a multiple of the tile) and class-dim padding (C < 128).
    N, C = 40, 40
    preds = jax.random.normal(k1, (N, C), dtype=jnp.float32)
    targets = jax.random.randint(k2, (N,), 0, C, dtype=jnp.int32)

    out = label_smooth_entropy(preds, targets, smooth=0.1, tile_n=16)
    out = jax.block_until_ready(out)

    ref = _reference(preds, targets, smooth=0.1)
    assert jnp.allclose(out, ref, atol=1e-4, rtol=1e-4), (out, ref)

    # TODO(synk): class_weights (None by default) and size_average='sum' branch
    # of the PyTorch module are not implemented; only the default 'mean' path.
    print("KERNEL_OK")
</pallas_src>

<mosaic_0001>
module attributes {stable_mosaic.version = 11 : i64} {
  func.func @_label_smooth_entropy_kernel(%arg0: i32, %arg1: memref<16x128xf32, #tpu.memory_space<vmem>>, %arg2: memref<16x1xi32, #tpu.memory_space<vmem>>, %arg3: memref<1x1xf32, #tpu.memory_space<vmem>>) attributes {dimension_semantics = [#tpu.dimension_semantics<arbitrary>], iteration_bounds = array<i64: 3>, scalar_prefetch = 0 : i64, scratch_operands = 0 : i64, tpu.core_type = #tpu.core_type<tc>, window_params = [{transform_indices = @transform_0, window_bounds = array<i64: 16, 128>}, {transform_indices = @transform_1, window_bounds = array<i64: 16, 1>}, {pipeline_mode = #tpu.pipeline_mode<synchronous>, transform_indices = @transform_2, window_bounds = array<i64: 1, 1>}]} {
    %c0 = arith.constant 0 : index
    %c0_0 = arith.constant 0 : index
    %0 = vector.load %arg1[%c0, %c0_0] : memref<16x128xf32, #tpu.memory_space<vmem>>, vector<16x128xf32>
    %c0_1 = arith.constant 0 : index
    %c0_2 = arith.constant 0 : index
    %1 = vector.load %arg2[%c0_1, %c0_2] : memref<16x1xi32, #tpu.memory_space<vmem>>, vector<16x1xi32>
    %2 = tpu.iota {dimensions = array<i32: 1>} : vector<16x128xi32>
    %c40_i32 = arith.constant 40 : i32
    %3 = vector.broadcast %c40_i32 : i32 to vector<16x128xi32>
    %4 = arith.cmpi slt, %2, %3 : vector<16x128xi32>
    %cst = arith.constant 0xFF800000 : f32
    %5 = vector.broadcast %cst : f32 to vector<16x128xf32>
    %6 = arith.select %4, %0, %5 : vector<16x128xi1>, vector<16x128xf32>
    %cst_3 = arith.constant dense<0xFF800000> : vector<16xf32>
    %7 = vector.multi_reduction <maximumf>, %6, %cst_3 [1] : vector<16x128xf32> to vector<16xf32>
    %8 = vector.shape_cast %7 : vector<16xf32> to vector<16x1xf32>
    %9 = vector.broadcast %8 : vector<16x1xf32> to vector<16x128xf32>
    %10 = arith.subf %0, %9 : vector<16x128xf32>
    %11 = math.exp %10 : vector<16x128xf32>
    %cst_4 = arith.constant 0.000000e+00 : f32
    %12 = vector.broadcast %cst_4 : f32 to vector<16x128xf32>
    %13 = arith.select %4, %11, %12 : vector<16x128xi1>, vector<16x128xf32>
    %cst_5 = arith.constant dense<0.000000e+00> : vector<16xf32>
    %14 = vector.multi_reduction <add>, %13, %cst_5 [1] : vector<16x128xf32> to vector<16xf32>
    %15 = vector.shape_cast %14 : vector<16xf32> to vector<16x1xf32>
    %16 = math.log %15 : vector<16x1xf32>
    %cst_6 = arith.constant 0.000000e+00 : f32
    %17 = vector.broadcast %cst_6 : f32 to vector<16x128xf32>
    %18 = arith.select %4, %0, %17 : vector<16x128xi1>, vector<16x128xf32>
    %cst_7 = arith.constant dense<0.000000e+00> : vector<16xf32>
    %19 = vector.multi_reduction <add>, %18, %cst_7 [1] : vector<16x128xf32> to vector<16xf32>
    %20 = vector.shape_cast %19 : vector<16xf32> to vector<16x1xf32>
    %21 = vector.broadcast %1 : vector<16x1xi32> to vector<16x128xi32>
    %22 = arith.cmpi eq, %2, %21 : vector<16x128xi32>
    %cst_8 = arith.constant 0.000000e+00 : f32
    %23 = vector.broadcast %cst_8 : f32 to vector<16x128xf32>
    %24 = arith.select %22, %0, %23 : vector<16x128xi1>, vector<16x128xf32>
    %cst_9 = arith.constant dense<0.000000e+00> : vector<16xf32>
    %25 = vector.multi_reduction <add>, %24, %cst_9 [1] : vector<16x128xf32> to vector<16xf32>
    %26 = vector.shape_cast %25 : vector<16xf32> to vector<16x1xf32>
    %27 = arith.addf %8, %16 : vector<16x1xf32>
    %cst_10 = arith.constant 4.000000e+01 : f32
    %28 = vector.broadcast %cst_10 : f32 to vector<16x1xf32>
    %29 = arith.mulf %28, %27 : vector<16x1xf32>
    %30 = arith.subf %20, %29 : vector<16x1xf32>
    %31 = arith.subf %26, %8 : vector<16x1xf32>
    %32 = arith.subf %31, %16 : vector<16x1xf32>
    %cst_11 = arith.constant -0.897435904 : f32
    %33 = vector.broadcast %cst_11 : f32 to vector<16x1xf32>
    %34 = arith.mulf %33, %32 : vector<16x1xf32>
    %cst_12 = arith.constant 0.00256410264 : f32
    %35 = vector.broadcast %cst_12 : f32 to vector<16x1xf32>
    %36 = arith.mulf %35, %30 : vector<16x1xf32>
    %37 = arith.subf %34, %36 : vector<16x1xf32>
    %38 = tpu.iota {dimensions = array<i32: 0>} : vector<16x1xi32>
    %c16_i32 = arith.constant 16 : i32
    %39 = arith.muli %arg0, %c16_i32 : i32
    %40 = vector.broadcast %39 : i32 to vector<16x1xi32>
    %41 = arith.addi %38, %40 : vector<16x1xi32>
    %c40_i32_13 = arith.constant 40 : i32
    %42 = vector.broadcast %c40_i32_13 : i32 to vector<16x1xi32>
    %43 = arith.cmpi slt, %41, %42 : vector<16x1xi32>
    %cst_14 = arith.constant 0.000000e+00 : f32
    %44 = vector.broadcast %cst_14 : f32 to vector<16x1xf32>
    %45 = arith.select %43, %37, %44 : vector<16x1xi1>, vector<16x1xf32>
    %cst_15 = arith.constant dense<0.000000e+00> : vector<1xf32>
    %46 = vector.multi_reduction <add>, %45, %cst_15 [0] : vector<16x1xf32> to vector<1xf32>
    %47 = vector.shape_cast %46 : vector<1xf32> to vector<1x1xf32>
    %c0_i32 = arith.constant 0 : i32
    %48 = arith.cmpi eq, %arg0, %c0_i32 : i32
    %49 = arith.extui %48 : i1 to i32
    %c0_i32_16 = arith.constant 0 : i32
    %50 = arith.cmpi ne, %49, %c0_i32_16 : i32
    scf.if %50 {
      %cst_22 = arith.constant 0.000000e+00 : f32
      %57 = vector.broadcast %cst_22 : f32 to vector<1x1xf32>
      %c0_23 = arith.constant 0 : index
      %c0_24 = arith.constant 0 : index
      %58 = vector.load %arg3[%c0_23, %c0_24] : memref<1x1xf32, #tpu.memory_space<vmem>>, vector<1x1xf32>
      tpu.vector_store %arg3[%c0_23, %c0_24], %57 {strides = array<i32>} : memref<1x1xf32, #tpu.memory_space<vmem>>, vector<1x1xf32>,
    } else {
    }
    %c0_17 = arith.constant 0 : index
    %c0_18 = arith.constant 0 : index
    %51 = vector.load %arg3[%c0_17, %c0_18] : memref<1x1xf32, #tpu.memory_space<vmem>>, vector<1x1xf32>
    %52 = arith.addf %51, %47 : vector<1x1xf32>
    %c0_19 = arith.constant 0 : index
    %c0_20 = arith.constant 0 : index
    %53 = vector.load %arg3[%c0_19, %c0_20] : memref<1x1xf32, #tpu.memory_space<vmem>>, vector<1x1xf32>
    tpu.vector_store %arg3[%c0_19, %c0_20], %52 {strides = array<i32>} : memref<1x1xf32, #tpu.memory_space<vmem>>, vector<1x1xf32>,
    %c2_i32 = arith.constant 2 : i32
    %54 = arith.cmpi eq, %arg0, %c2_i32 : i32
    %55 = arith.extui %54 : i1 to i32
    %c0_i32_21 = arith.constant 0 : i32
    %56 = arith.cmpi ne, %55, %c0_i32_21 : i32
    scf.if %56 {
      %c0_22 = arith.constant 0 : index
      %c0_23 = arith.constant 0 : index
      %57 = vector.load %arg3[%c0_22, %c0_23] : memref<1x1xf32, #tpu.memory_space<vmem>>, vector<1x1xf32>
      %cst_24 = arith.constant 2.500000e-02 : f32
      %58 = vector.broadcast %cst_24 : f32 to vector<1x1xf32>
      %59 = arith.mulf %57, %58 : vector<1x1xf32>
      %c0_25 = arith.constant 0 : index
      %c0_26 = arith.constant 0 : index
      %60 = vector.load %arg3[%c0_25, %c0_26] : memref<1x1xf32, #tpu.memory_space<vmem>>, vector<1x1xf32>
      tpu.vector_store %arg3[%c0_25, %c0_26], %59 {strides = array<i32>} : memref<1x1xf32, #tpu.memory_space<vmem>>, vector<1x1xf32>,
    } else {
    }
    return
  }
  func.func @transform_0(%arg0: i32) -> (i32, i32) {
    %c0_i32 = arith.constant 0 : i32
    %c0_i32_0 = arith.constant 0 : i32
    return %arg0, %c0_i32 : i32, i32
  }
  func.func @transform_1(%arg0: i32) -> (i32, i32) {
    %c0_i32 = arith.constant 0 : i32
    %c0_i32_0 = arith.constant 0 : i32
    return %arg0, %c0_i32 : i32, i32
  }
  func.func @transform_2(%arg0: i32) -> (i32, i32) {
    %c0_i32 = arith.constant 0 : i32
    %c0_i32_0 = arith.constant 0 : i32
    %c0_i32_1 = arith.constant 0 : i32
    return %c0_i32, %c0_i32_0 : i32, i32
  }
}

</mosaic_0001>

<llo_original>
// kernel: tpu_custom_call.1
$region0: #{tpu_custom_call.1}
  #allocation0 [shape = 'u32[]', space=smem, size = 0x4, offset = 0x4, fixed_abs, tag = 'smem constant byte address 0x4 - core index']
  #allocation1 [shape = 'u32[144,128]{1,0:T(1,128)}', space=vmem, size = 0x12000, scoped, tag = 'internal scratch']
  %s0 = inlined_call_operand.vmem [shape: f32[48,128], index: 0, kind: input, shape index: {}]
  %s1 = inlined_call_operand.vmem [shape: s32[48,1], index: 1, kind: input, shape index: {}]
  %s2 = inlined_call_operand.hbm [shape: f32[1,1], index: 2, kind: output, shape index: {}]
  %s3 = sld [smem:[#allocation0]]
  $region49: #{tpu_custom_call.1} parent=0
    _
  %s5 = ssub.s32 1, %s3
  %s6 = scalar_select 0, %s5, %s3
  $region1: #{tpu_custom_call.1} parent=0
    #allocation2 [shape = 'u8[512]{0}', space=vmem, size = 0x400, scoped, tag = 'output window, operand 0, single buffered']
    #allocation3 [shape = 's32[2]{0}', space=sflag, size = 0x8, scoped, tag = 'scoped memory for tpu_custom_call.1']
    %7 = vsyncpa [#allocation3], 0
    loop: start=0, step=1, limit=5
    $region2: #{tpu_custom_call.1} parent=1 // loop_pre_header
      _
    $region3: #{tpu_custom_call.1} parent=1 // loop_header
      %s9 = sphi 0, %s13
      %p10 = scmp.ge.s32.totalorder %s9, 5
      %s19 = sphi 0, %s21
      %s22 = sphi 0, %s19
      %s23 = sphi 0, %s22
      %s39 = sphi 0, %s23
      %s45 = sphi 0, %s47
      %s48 = sphi 0, %s45
      %s49 = sphi 0, %s48
      %s65 = sphi 0, %s49
      %s69 = sphi 0, %s69
      %s71 = sphi 0, %s69
      %s72 = sphi 0, %s71
      %s86 = sphi 0, %s72
    $region4: #{tpu_custom_call.1} parent=1 // loop_header_branch
      %12 = sbr.rel (%p10) target = $region8
    $region5: #{tpu_custom_call.1} parent=1 // loop_body
      %s14 = ssub.s32 %s9, 1
      %s15 = ssub.s32 %s9, 2
      %s16 = sadd.s32 %s9, 1
      %s17 = ssub.s32 %s9, %s16
      %p18 = scmp.eq.s32.totalorder %s17, 0
      %s20 = sadd.s32 %s19, 1
      %s21 = scalar_select %p18, %s19, %s20
      %p24 = pneg %p18
      %p25 = scmp.eq.s32.totalorder %s9, 2
      %p26 = por %p24, %p25
      %p27 = scmp.ne.s32.totalorder %s19, %s22
      %p28 = scmp.eq.s32.totalorder %s9, 0
      %p29 = por %p27, %p28
      %p30 = scmp.ne.s32.totalorder %s19, %s22
      %p31 = scmp.eq.s32.totalorder %s14, 2
      %p32 = por %p30, %p31
      %p33 = scmp.ne.s32.totalorder %s22, %s23
      %p34 = scmp.eq.s32.totalorder %s14, 0
      %p35 = por %p33, %p34
      %p36 = scmp.ne.s32.totalorder %s22, %s23
      %p37 = scmp.eq.s32.totalorder %s15, 2
      %p38 = por %p36, %p37
      %p40 = scmp.ne.s32.totalorder %s23, %s39
      %p41 = scmp.eq.s32.totalorder %s15, 0
      %p42 = por %p40, %p41
      %s43 = ssub.s32 %s9, %s16
      %p44 = scmp.eq.s32.totalorder %s43, 0
      %s46 = sadd.s32 %s45, 1
      %s47 = scalar_select %p44, %s45, %s46
      %p50 = pneg %p44
      %p51 = scmp.eq.s32.totalorder %s9, 2
      %p52 = por %p50, %p51
      %p53 = scmp.ne.s32.totalorder %s45, %s48
      %p54 = scmp.eq.s32.totalorder %s9, 0
      %p55 = por %p53, %p54
      %p56 = scmp.ne.s32.totalorder %s45, %s48
      %p57 = scmp.eq.s32.totalorder %s14, 2
      %p58 = por %p56, %p57
      %p59 = scmp.ne.s32.totalorder %s48, %s49
      %p60 = scmp.eq.s32.totalorder %s14, 0
      %p61 = por %p59, %p60
      %p62 = scmp.ne.s32.totalorder %s48, %s49
      %p63 = scmp.eq.s32.totalorder %s15, 2
      %p64 = por %p62, %p63
      %p66 = scmp.ne.s32.totalorder %s49, %s65
      %p67 = scmp.eq.s32.totalorder %s15, 0
      %p68 = por %p66, %p67
      %s70 = sadd.s32 %s69, 1
      %p73 = scmp.eq.s32.totalorder %s9, 2
      %p74 = scmp.ne.s32.totalorder %s69, %s71
      %p75 = scmp.eq.s32.totalorder %s9, 0
      %p76 = por %p74, %p75
      %p77 = scmp.ne.s32.totalorder %s69, %s71
      %p78 = scmp.eq.s32.totalorder %s14, 2
      %p79 = por %p77, %p78
      %p80 = scmp.ne.s32.totalorder %s71, %s72
      %p81 = scmp.eq.s32.totalorder %s14, 0
      %p82 = por %p80, %p81
      %p83 = scmp.ne.s32.totalorder %s71, %s72
      %p84 = scmp.eq.s32.totalorder %s15, 2
      %p85 = por %p83, %p84
      %p87 = scmp.ne.s32.totalorder %s72, %s86
      %p88 = scmp.eq.s32.totalorder %s15, 0
      %p89 = por %p87, %p88
      %p90 = scmp.le.s32.totalorder 1, %s9
      %p91 = scmp.lt.s32.totalorder %s9, 4
      %p92 = pnand %p90, %p91
      %p93 = pneg %p92
      // Predicated region
      $region9: #{tpu_custom_call.1} parent=5 // pred_check
        _
      $region10: #{tpu_custom_call.1} parent=5 // pred_check_branch
        %95 = sbr.rel (%p92) target = $region12
      $region11: #{tpu_custom_call.1} parent=5 // pred_region
        %s96 = ssub.s32 %s9, 1
      $region12: #{tpu_custom_call.1} parent=5 // pred_fallthru
        _
      %p97 = scmp.lt.s32.totalorder %s9, 3
      // Predicated region
      $region13: #{tpu_custom_call.1} parent=5 // pred_check
        %p98 = pneg %p97
      $region14: #{tpu_custom_call.1} parent=5 // pred_check_branch
        %100 = sbr.rel (%p98) target = $region16
      $region15: #{tpu_custom_call.1} parent=5 // pred_region
        // Predicated region
        $region17: #{tpu_custom_call.1} parent=15 // pred_check
          %p101 = pneg %p29
        $region18: #{tpu_custom_call.1} parent=15 // pred_check_branch
          %103 = sbr.rel (%p101) target = $region20
        $region19: #{tpu_custom_call.1} parent=15 // pred_region
          %s104 = smul.u32 2, %s9
          %p105 = scmp.lt.s32.totalorder %s104, 5
          %s106 = scalar_select %p105, %s104, 5
          %s107 = smul.addr %s106, 8
          %s108 = scalar_lea.vmem %s0, %s107
          %s109 = smul.u32 2, %s9
        $region20: #{tpu_custom_call.1} parent=15 // pred_fallthru
          _
        // Predicated region
        $region21: #{tpu_custom_call.1} parent=15 // pred_check
          %p110 = pneg %p55
        $region22: #{tpu_custom_call.1} parent=15 // pred_check_branch
          %112 = sbr.rel (%p110) target = $region24
        $region23: #{tpu_custom_call.1} parent=15 // pred_region
          %s113 = smul.u32 2, %s9
          %p114 = scmp.lt.s32.totalorder %s113, 5
          %s115 = scalar_select %p114, %s113, 5
          %s116 = smul.addr %s115, 8
          %s117 = scalar_lea.vmem %s1, %s116
          %s118 = smul.u32 2, %s9
        $region24: #{tpu_custom_call.1} parent=15 // pred_fallthru
          _
      $region16: #{tpu_custom_call.1} parent=5 // pred_fallthru
        _
      %p119 = scmp.le.s32.totalorder 1, %s9
      %p120 = scmp.lt.s32.totalorder %s9, 4
      %p121 = pnand %p119, %p120
      %p122 = pneg %p121
      // Predicated region
      $region25: #{tpu_custom_call.1} parent=5 // pred_check
        _
      $region26: #{tpu_custom_call.1} parent=5 // pred_check_branch
        %124 = sbr.rel (%p121) target = $region28
      $region27: #{tpu_custom_call.1} parent=5 // pred_region
        %s125 = ssub.s32 %s9, 1
        %s126 = smul.u32 2, %s14
        %p127 = scmp.lt.s32.totalorder %s126, 5
        %s128 = scalar_select %p127, %s126, 5
        %s129 = smul.addr %s128, 8
        %s130 = scalar_lea.vmem %s0, %s129
        %p131 = pneg %p35
        %p132 = pneg %p32
        %s133 = smul.u32 2, %s14
        %p134 = scmp.lt.s32.totalorder %s133, 5
        %s135 = scalar_select %p134, %s133, 5
        %s136 = smul.addr %s135, 8
        %s137 = scalar_lea.vmem %s1, %s136
        %p138 = pneg %p61
        %p139 = pneg %p58
        %p140 = pneg %p82
        %p141 = pneg %p79
        %s142 = smul.u32 2, %s14
        %p143 = scmp.lt.s32.totalorder %s142, 5
        %s144 = scalar_select %p143, %s142, 5
        %s145 = smul.addr %s144, 8
        %s146 = scalar_lea.vmem %s0, %s145
        %s147 = smul.u32 2, %s14
        %s148 = smul.u32 2, %s14
        %p149 = scmp.lt.s32.totalorder %s148, 5
        %s150 = scalar_select %p149, %s148, 5
        %s151 = smul.addr %s150, 8
        %s152 = scalar_lea.vmem %s1, %s151
        %s153 = smul.u32 2, %s14
        %v154 = vld [vmem:[%s146] sm:$0xff]
        %v155 = vld [vmem:[%s146 + $0x8] sm:$0xff]
        %v156 = vld [vmem:[%s152] sm:$0xff]
        %v157 = vld [vmem:[%s152 + $0x8] sm:$0xff]
        %v158 = vlaneseq
        %v159 = vand.u32 %v158, 127
        %vm160 = vcmp.lt.s32.totalorder %v159, 40
        %v161 = vsel %vm160, %v154, -inf
        %v162 = vsel %vm160, %v155, -inf
        %163 = vmax.xlane.f32.xlu0 %v161
        %v164 = vpop.xlane.xlu0 %163
        %165 = vmax.xlane.f32.xlu0 %v162
        %v166 = vpop.xlane.xlu0 %165
        %v167 = vsub.f32 %v154, %v164
        %v168 = vsub.f32 %v155, %v166
        %v169 = vmul.f32 %v167, 1.442695
        %v170 = vpow.pop %v169
        %v171 = vmul.f32 %v168, 1.442695
        %v172 = vpow.pop %v171
        %v173 = vsel %vm160, %v170, 0.0
        %v174 = vsel %vm160, %v172, 0.0
        %175 = vadd.xlane.f32.xlu0 %v173
        %v176 = vpop.xlane.xlu0 %175
        %177 = vadd.xlane.f32.xlu0 %v174
        %v178 = vpop.xlane.xlu0 %177
        %v179 = vlog2.pop %v176
        %v180 = vmul.f32 %v179, 0.6931472
        %v181 = vlog2.pop %v178
        %v182 = vmul.f32 %v181, 0.6931472
        %v183 = vsel %vm160, %v154, 0.0
        %v184 = vsel %vm160, %v155, 0.0
        %185 = vadd.xlane.f32.xlu0 %v183
        %v186 = vpop.xlane.xlu0 %185
        %187 = vadd.xlane.f32.xlu0 %v184
        %v188 = vpop.xlane.xlu0 %187
        %189 = vset.pattern.permute.xlu0 0
        %190 = vperm.xlu0 %189, %v156
        %v191 = vpop.permute.xlu0 %190
        %192 = vset.pattern.permute.xlu0 0
        %193 = vperm.xlu0 %192, %v157
        %v194 = vpop.permute.xlu0 %193
        %vm195 = vcmp.eq.s32.totalorder %v159, %v191
        %vm196 = vcmp.eq.s32.totalorder %v159, %v194
        %v197 = vsel %vm195, %v154, 0.0
        %v198 = vsel %vm196, %v155, 0.0
        %199 = vadd.xlane.f32.xlu0 %v197
        %v200 = vpop.xlane.xlu0 %199
        %201 = vadd.xlane.f32.xlu0 %v198
        %v202 = vpop.xlane.xlu0 %201
        %v203 = vadd.f32 %v164, %v180
        %v204 = vadd.f32 %v166, %v182
        %v205 = vmul.f32 %v203, 40.0
        %v206 = vmul.f32 %v204, 40.0
        %v207 = vsub.f32 %v186, %v205
        %v208 = vsub.f32 %v188, %v206
        %v209 = vsub.f32 %v200, %v164
        %v210 = vsub.f32 %v202, %v166
        %v211 = vsub.f32 %v209, %v180
        %v212 = vsub.f32 %v210, %v182
        %v213 = vmul.f32 %v211, -0.8974359
        %v214 = vmul.f32 %v212, -0.8974359
        %v215 = vmul.f32 %v207, 0.0025641026
        %v216 = vmul.f32 %v208, 0.0025641026
        %v217 = vsub.f32 %v213, %v215
        %v218 = vsub.f32 %v214, %v216
        %v219 = vlaneseq
        %v220 = vshrl.u32 %v219, 7
        %v221 = vadd.s32 %v220, 8
        %s222 = smul.u32 %s14, 16
        %v223 = vstv %s222
        %v224 = vadd.s32 %v220, %v223
        %v225 = vadd.s32 %v221, %v223
        %vm226 = vcmp.lt.s32.totalorder %v224, 40
        %vm227 = vcmp.lt.s32.totalorder %v225, 40
        %v228 = vsel %vm226, %v217, 0.0
        %v229 = vsel %vm227, %v218, 0.0
        %v230 = vadd.f32 %v228, %v229
        %v231 = vrot.slane %v230, 4
        %v232 = vadd.f32 %v230, %v231
        %v233 = vrot.slane %v232, 2
        %v234 = vadd.f32 %v232, %v233
        %v235 = vrot.slane %v234, 1
        %v236 = vadd.f32 %v234, %v235
        %p237 = scmp.eq.s32.totalorder %s14, 0
        // Predicated region
        $region29: #{tpu_custom_call.1} parent=27 // pred_check
          %p238 = pneg %p237
        $region30: #{tpu_custom_call.1} parent=27 // pred_check_branch
          %240 = sbr.rel (%p238) target = $region32
        $region31: #{tpu_custom_call.1} parent=27 // pred_region
          %vm241 = vcmask 0
          %242 = vst.msk [vmem:[#allocation2] sm:$0x1] %vm241, 0.0
        $region32: #{tpu_custom_call.1} parent=27 // pred_fallthru
          _
        %v243 = vld [vmem:[#allocation2] sm:$0x1]
        %v244 = vadd.f32 %v243, %v236
        %vm245 = vcmask 0
        %246 = vst.msk [vmem:[#allocation2] sm:$0x1] %vm245, %v244
        %p247 = scmp.eq.s32.totalorder %s14, 2
        // Predicated region
        $region33: #{tpu_custom_call.1} parent=27 // pred_check
          %p248 = pneg %p247
        $region34: #{tpu_custom_call.1} parent=27 // pred_check_branch
          %250 = sbr.rel (%p248) target = $region36
        $region35: #{tpu_custom_call.1} parent=27 // pred_region
          %v251 = vld [vmem:[#allocation2] sm:$0x1]
          %v252 = vmul.f32 %v251, 0.025
          %253 = vst.msk [vmem:[#allocation2] sm:$0x1] %vm245, %v252
        $region36: #{tpu_custom_call.1} parent=27 // pred_fallthru
          _
        // Predicated region
        $region37: #{tpu_custom_call.1} parent=27 // pred_check
          %p254 = pneg %p79
        $region38: #{tpu_custom_call.1} parent=27 // pred_check_branch
          %256 = sbr.rel (%p254) target = $region40
        $region39: #{tpu_custom_call.1} parent=27 // pred_region
          %s258 = ssub.s32 16, 16
          %259 = vsyncadd [#allocation3], %s258
          %s261 = sshll.u32 [#allocation2], 4
          %s262 = int_to_ptr.vmem [resolvable:$true] %s261
          %264 = dma.vmem_to_hbm [thread:$0]  %s262, 16, %s2, [#allocation3]
        $region40: #{tpu_custom_call.1} parent=27 // pred_fallthru
          _
        // Predicated region
        $region41: #{tpu_custom_call.1} parent=27 // pred_check
          %p265 = pneg %p79
        $region42: #{tpu_custom_call.1} parent=27 // pred_check_branch
          %267 = sbr.rel (%p265) target = $region44
        $region43: #{tpu_custom_call.1} parent=27 // pred_region
          %268 = dma.done [#allocation3], 16
        $region44: #{tpu_custom_call.1} parent=27 // pred_fallthru
          _
      $region28: #{tpu_custom_call.1} parent=5 // pred_fallthru
        _
      %p269 = scmp.le.s32.totalorder 2, %s9
      // Predicated region
      $region45: #{tpu_custom_call.1} parent=5 // pred_check
        %p270 = pneg %p269
      $region46: #{tpu_custom_call.1} parent=5 // pred_check_branch
        %272 = sbr.rel (%p270) target = $region48
      $region47: #{tpu_custom_call.1} parent=5 // pred_region
        %s273 = ssub.s32 %s9, 2
      $region48: #{tpu_custom_call.1} parent=5 // pred_fallthru
        _
    $region6: #{tpu_custom_call.1} parent=1 // loop_footer
      %s13 = sadd.s32 1, %s9
    $region7: #{tpu_custom_call.1} parent=1 // loop_footer_branch
      %8 = sbr.rel target = $region3
    $region8: #{tpu_custom_call.1} parent=1 // loop_exit
      _
    %274 = vsyncpa [#allocation3], 1
    %s275 = scalar_lea.sflag [#allocation3], 1
    %276 = vsyncpa %s275, 1

</llo_original>
